<compile_context>
chip_gen: v6e
topology: v6e:2x2x1
jax: 0.10.0
libtpu: 0.0.40
codegen_flags: <defaults>
</compile_context>

<pallas_src>
import functools

import jax
import jax.numpy as jnp
from jax import lax
from jax.experimental import pallas as pl
from jax.experimental.pallas import tpu as pltpu

LANES = 128
# Total double-buffered HBM->VMEM input budget (both operands, both pipeline
# buffers). 16 MiB => 8192-row f32 / 16384-row bf16 blocks; a grid step then
# moves 8 MiB, keeping the fixed per-step overhead small even at v7x's
# ~3.2 TB/s, while inputs + elementwise temps stay safely below 64 MiB VMEM.
INPUT_VMEM_BUDGET = 16 * 1024 * 1024
VMEM_LIMIT_BYTES = 48 * 1024 * 1024   # explicit scoped limit, safe on v5e/v6e/v7x
ACC_ROWS_MAX = 64                     # 8 independent (8,128) accumulator vregs -> VALU ILP


def _rel_err_kernel(pred_ref, tgt_ref, out_ref, acc_ref, *,
                    eps, rows, block_rows, total_tiles, acc_rows,
                    needs_row_mask, has_overhang):
    c = pl.program_id(0)          # TensorCore split ("parallel")
    i = pl.program_id(1)          # streaming/reduction axis ("arbitrary")
    inner = pl.num_programs(1)
    global_block = c * inner + i  # row-tile index (may overhang on odd tile counts)

    @pl.when(i == 0)
    def _():
        acc_ref[...] = jnp.zeros_like(acc_ref)

    # In-kernel upcast (free on VPU); wrapper never touches dtype.
    p = pred_ref[...].astype(jnp.float32)
    t = tgt_ref[...].astype(jnp.float32)
    # Perf knob: `(p - t) * pl.reciprocal(t + eps, approx=True)` moves the
    # reciprocal to the EUP slot, but costs ~2^-12 relative accuracy vs the
    # PyTorch reference; keep the exact divide so rtol=1e-5 holds tightly.
    rel = jnp.abs((p - t) / (t + jnp.float32(eps)))

    def _accumulate(vals):
        # Fold the row-tile axis onto `acc_rows` accumulator rows (8 independent
        # vreg chains when acc_rows == 64) -> VPU-only adds with ILP.
        acc_ref[...] += vals.reshape(block_rows // acc_rows, acc_rows, LANES
                                     ).sum(axis=0)

    if needs_row_mask:
        # Last real tile hangs past `rows`: mask by *row* index (int32-safe for
        # any tensor with < 2**31 rows, i.e. < 2**38 elements).  The overhang
        # tile (global_block == total_tiles) matches neither branch -> skipped.
        @pl.when(global_block < total_tiles - 1)
        def _():
            _accumulate(rel)

        @pl.when(global_block == total_tiles - 1)
        def _():
            row_ids = lax.broadcasted_iota(jnp.int32, (block_rows, LANES), 0)
            valid = (global_block * block_rows + row_ids) < rows
            _accumulate(jnp.where(valid, rel, jnp.float32(0.0)))
    elif has_overhang:
        # Odd tile count with the 2-core split: core 1's final step re-reads a
        # clamped tile; skip accumulating it.
        @pl.when(global_block < total_tiles)
        def _():
            _accumulate(rel)
    else:
        _accumulate(rel)

    @pl.when(i == inner - 1)
    def _():
        # One cross-sublane (XLU) reduce per core at the very end -> lane-dense
        # (1, 128) partial-sum row per core.
        out_ref[...] = jnp.sum(acc_ref[...], axis=0).reshape(1, 1, LANES)


def relative_error_loss(pred, target, eps=1e-8, *, max_block_rows=None):
    """Pallas TPU equivalent of RelativeErrorLoss.forward. Returns f32 scalar.

    max_block_rows is a test/tuning knob to force small row tiles.
    """
    assert pred.shape == target.shape, "pred/target shape mismatch"
    count = pred.size
    assert count > 0, "empty input"

    flat_pred = pred.reshape(-1)
    flat_tgt = target.reshape(-1)

    rows = count // LANES          # full 128-lane rows handled by the kernel
    main = rows * LANES
    tail = count - main

    # <128-element ragged tail: summed in plain JAX (tiny). No full-tensor pad
    # copy and no lane masking in the kernel.
    tail_sum = None
    if tail:
        tp = flat_pred[main:].astype(jnp.float32)
        tt = flat_tgt[main:].astype(jnp.float32)
        tail_sum = jnp.sum(jnp.abs((tp - tt) / (tt + jnp.float32(eps))))

    if rows == 0:
        return tail_sum / jnp.float32(count)

    pred2d = (flat_pred[:main] if tail else flat_pred).reshape(rows, LANES)
    tgt2d = (flat_tgt[:main] if tail else flat_tgt).reshape(rows, LANES)

    # Block rows from a byte budget (dtype-aware) so every dtype amortizes the
    # per-grid-step overhead equally; multiple of 64 for the accumulator fold
    # and (8,128)/(16,128) layout alignment.
    bytes_per_row = LANES * (jnp.dtype(pred.dtype).itemsize
                             + jnp.dtype(target.dtype).itemsize)
    budget_rows = max(64, (INPUT_VMEM_BUDGET // (2 * bytes_per_row)) // 64 * 64)
    if max_block_rows is not None:
        budget_rows = min(budget_rows, max_block_rows)
    block_rows = min(budget_rows, rows)

    total_tiles = pl.cdiv(rows, block_rows)

    # Unconditional 2-TensorCore split whenever there are >= 2 tiles (v7x
    # megacore); odd tile counts cost one clamped no-op step on core 1 instead
    # of idling a whole core. Harmless sequential loop on v5e/v6e.
    outer = 2 if total_tiles >= 2 else 1
    inner = pl.cdiv(total_tiles, outer)
    has_overhang = outer * inner != total_tiles
    needs_row_mask = total_tiles * block_rows != rows

    if block_rows % ACC_ROWS_MAX == 0:
        acc_rows = ACC_ROWS_MAX
    elif block_rows % 8 == 0:
        acc_rows = 8
    else:
        acc_rows = block_rows      # tiny single-tile fallback (block == full array)

    kernel = functools.partial(
        _rel_err_kernel, eps=float(eps), rows=rows, block_rows=block_rows,
        total_tiles=total_tiles, acc_rows=acc_rows,
        needs_row_mask=needs_row_mask, has_overhang=has_overhang)

    in_bytes = count * (jnp.dtype(pred.dtype).itemsize
                        + jnp.dtype(target.dtype).itemsize)
    cost = pl.CostEstimate(flops=5 * count, transcendentals=0,
                           bytes_accessed=in_bytes + outer * LANES * 4)

    # Clamp the block index so core 1's overhang step reads a valid tile
    # (its accumulation is skipped inside the kernel).
    in_map = lambda c, i: (jnp.minimum(c * inner + i, total_tiles - 1), 0)

    partials = pl.pallas_call(
        kernel,
        out_shape=jax.ShapeDtypeStruct((outer, 1, LANES), jnp.float32),
        grid_spec=pltpu.PrefetchScalarGridSpec(
            num_scalar_prefetch=0,
            grid=(outer, inner),
            in_specs=[
                pl.BlockSpec((block_rows, LANES), in_map),
                pl.BlockSpec((block_rows, LANES), in_map),
            ],
            out_specs=pl.BlockSpec((1, 1, LANES), lambda c, i: (c, 0, 0)),
            scratch_shapes=[pltpu.VMEM((acc_rows, LANES), jnp.float32)],
        ),
        compiler_params=pltpu.CompilerParams(
            dimension_semantics=("parallel", "arbitrary"),
            vmem_limit_bytes=VMEM_LIMIT_BYTES,
        ),
        cost_estimate=cost,
    )(pred2d, tgt2d)

    kernel_sum = jnp.sum(partials)
    if tail:
        kernel_sum = kernel_sum + tail_sum
    return kernel_sum / jnp.float32(count)


if __name__ == "__main__":
    key = jax.random.PRNGKey(0)
    k1, k2 = jax.random.split(key)

    # 1) Small NCHW-style shape consistent with a typical use of this loss.
    shape = (2, 4, 16, 16)
    pred = jax.random.normal(k1, shape, dtype=jnp.float32)
    target = jax.random.normal(k2, shape, dtype=jnp.float32) + 2.0  # away from 0
    loss = relative_error_loss(pred, target, eps=1e-8)
    loss = jax.block_until_ready(loss)
    ref = jnp.mean(jnp.abs((pred - target) / (target + 1e-8)))
    assert jnp.allclose(loss, ref, rtol=1e-5, atol=1e-6), (loss, ref)

    # 2) Odd tile count + ragged last tile: exercises the 2-core overhang skip
    #    and the in-kernel row mask (forced small tiles via max_block_rows).
    shape2 = (2, 4, 16, 20)     # 2560 elems -> 20 rows, block_rows=8 -> 3 tiles
    p2 = jax.random.normal(k1, shape2, dtype=jnp.float32)
    t2 = jax.random.normal(k2, shape2, dtype=jnp.float32) + 2.0
    loss2 = relative_error_loss(p2, t2, eps=1e-8, max_block_rows=8)
    ref2 = jnp.mean(jnp.abs((p2 - t2) / (t2 + 1e-8)))
    assert jnp.allclose(loss2, ref2, rtol=1e-5, atol=1e-6), (loss2, ref2)

    # 3) numel % 128 != 0: wrapper-side tail path (no pad copy).
    shape3 = (3, 5, 11)         # 165 elems -> 1 full row + 37-elem tail
    p3 = jax.random.normal(k1, shape3, dtype=jnp.float32)
    t3 = jax.random.normal(k2, shape3, dtype=jnp.float32) + 2.0
    loss3 = relative_error_loss(p3, t3, eps=1e-8)
    ref3 = jnp.mean(jnp.abs((p3 - t3) / (t3 + 1e-8)))
    assert jnp.allclose(loss3, ref3, rtol=1e-5, atol=1e-6), (loss3, ref3)

    # 4) numel < 128: tail-only path (no kernel launch).
    shape4 = (5, 7)
    p4 = jax.random.normal(k1, shape4, dtype=jnp.float32)
    t4 = jax.random.normal(k2, shape4, dtype=jnp.float32) + 2.0
    loss4 = relative_error_loss(p4, t4, eps=1e-8)
    ref4 = jnp.mean(jnp.abs((p4 - t4) / (t4 + 1e-8)))
    assert jnp.allclose(loss4, ref4, rtol=1e-5, atol=1e-6), (loss4, ref4)

    jax.block_until_ready((loss, loss2, loss3, loss4))
    print("KERNEL_OK")
</pallas_src>

<mosaic_0001>
module attributes {stable_mosaic.version = 11 : i64} {
  func.func @_rel_err_kernel(%arg0: i32, %arg1: i32, %arg2: memref<16x128xf32, #tpu.memory_space<vmem>>, %arg3: memref<16x128xf32, #tpu.memory_space<vmem>>, %arg4: memref<1x1x128xf32, #tpu.memory_space<vmem>>, %arg5: memref<8x128xf32, #tpu.memory_space<vmem>>) attributes {dimension_semantics = [#tpu.dimension_semantics<parallel>, #tpu.dimension_semantics<arbitrary>], iteration_bounds = array<i64: 1, 1>, scalar_prefetch = 0 : i64, scratch_operands = 1 : i64, tpu.core_type = #tpu.core_type<tc>, window_params = [{transform_indices = @transform_0, window_bounds = array<i64: 16, 128>}, {transform_indices = @transform_1, window_bounds = array<i64: 16, 128>}, {transform_indices = @transform_2, window_bounds = array<i64: 1, 1, 128>}]} {
    %c0_i32 = arith.constant 0 : i32
    %0 = arith.cmpi eq, %arg1, %c0_i32 : i32
    %1 = arith.extui %0 : i1 to i32
    %c0_i32_0 = arith.constant 0 : i32
    %2 = arith.cmpi ne, %1, %c0_i32_0 : i32
    scf.if %2 {
      %cst_11 = arith.constant 0.000000e+00 : f32
      %18 = vector.broadcast %cst_11 : f32 to vector<8x128xf32>
      %c0_12 = arith.constant 0 : index
      %c0_13 = arith.constant 0 : index
      %19 = vector.load %arg5[%c0_12, %c0_13] : memref<8x128xf32, #tpu.memory_space<vmem>>, vector<8x128xf32>
      tpu.vector_store %arg5[%c0_12, %c0_13], %18 {strides = array<i32>} : memref<8x128xf32, #tpu.memory_space<vmem>>, vector<8x128xf32>,
    } else {
    }
    %c0 = arith.constant 0 : index
    %c0_1 = arith.constant 0 : index
    %3 = vector.load %arg2[%c0, %c0_1] : memref<16x128xf32, #tpu.memory_space<vmem>>, vector<16x128xf32>
    %c0_2 = arith.constant 0 : index
    %c0_3 = arith.constant 0 : index
    %4 = vector.load %arg3[%c0_2, %c0_3] : memref<16x128xf32, #tpu.memory_space<vmem>>, vector<16x128xf32>
    %5 = arith.subf %3, %4 : vector<16x128xf32>
    %cst = arith.constant 9.99999993E-9 : f32
    %6 = vector.broadcast %cst : f32 to vector<16x128xf32>
    %7 = arith.addf %4, %6 : vector<16x128xf32>
    %8 = arith.divf %5, %7 : vector<16x128xf32>
    %9 = math.absf %8 : vector<16x128xf32>
    %c0_4 = arith.constant 0 : index
    %c0_5 = arith.constant 0 : index
    %10 = vector.load %arg5[%c0_4, %c0_5] : memref<8x128xf32, #tpu.memory_space<vmem>>, vector<8x128xf32>
    %11 = vector.shape_cast %9 : vector<16x128xf32> to vector<2x8x128xf32>
    %cst_6 = arith.constant dense<0.000000e+00> : vector<8x128xf32>
    %12 = vector.multi_reduction <add>, %11, %cst_6 [0] : vector<2x8x128xf32> to vector<8x128xf32>
    %13 = arith.addf %10, %12 : vector<8x128xf32>
    %c0_7 = arith.constant 0 : index
    %c0_8 = arith.constant 0 : index
    %14 = vector.load %arg5[%c0_7, %c0_8] : memref<8x128xf32, #tpu.memory_space<vmem>>, vector<8x128xf32>
    tpu.vector_store %arg5[%c0_7, %c0_8], %13 {strides = array<i32>} : memref<8x128xf32, #tpu.memory_space<vmem>>, vector<8x128xf32>,
    %c0_i32_9 = arith.constant 0 : i32
    %15 = arith.cmpi eq, %arg1, %c0_i32_9 : i32
    %16 = arith.extui %15 : i1 to i32
    %c0_i32_10 = arith.constant 0 : i32
    %17 = arith.cmpi ne, %16, %c0_i32_10 : i32
    scf.if %17 {
      %c0_11 = arith.constant 0 : index
      %c0_12 = arith.constant 0 : index
      %18 = vector.load %arg5[%c0_11, %c0_12] : memref<8x128xf32, #tpu.memory_space<vmem>>, vector<8x128xf32>
      %cst_13 = arith.constant dense<0.000000e+00> : vector<128xf32>
      %19 = vector.multi_reduction <add>, %18, %cst_13 [0] : vector<8x128xf32> to vector<128xf32>
      %20 = vector.shape_cast %19 : vector<128xf32> to vector<1x1x128xf32>
      %c0_14 = arith.constant 0 : index
      %c0_15 = arith.constant 0 : index
      %c0_16 = arith.constant 0 : index
      %21 = vector.load %arg4[%c0_14, %c0_15, %c0_16] : memref<1x1x128xf32, #tpu.memory_space<vmem>>, vector<1x1x128xf32>
      tpu.vector_store %arg4[%c0_14, %c0_15, %c0_16], %20 {strides = array<i32>} : memref<1x1x128xf32, #tpu.memory_space<vmem>>, vector<1x1x128xf32>,
    } else {
    }
    return
  }
  func.func @transform_0(%arg0: i32, %arg1: i32) -> (i32, i32) {
    %c1_i32 = arith.constant 1 : i32
    %0 = arith.muli %arg0, %c1_i32 : i32
    %1 = arith.addi %0, %arg1 : i32
    %c0_i32 = arith.constant 0 : i32
    %2 = arith.minsi %1, %c0_i32 : i32
    %c0_i32_0 = arith.constant 0 : i32
    %c0_i32_1 = arith.constant 0 : i32
    return %2, %c0_i32_0 : i32, i32
  }
  func.func @transform_1(%arg0: i32, %arg1: i32) -> (i32, i32) {
    %c1_i32 = arith.constant 1 : i32
    %0 = arith.muli %arg0, %c1_i32 : i32
    %1 = arith.addi %0, %arg1 : i32
    %c0_i32 = arith.constant 0 : i32
    %2 = arith.minsi %1, %c0_i32 : i32
    %c0_i32_0 = arith.constant 0 : i32
    %c0_i32_1 = arith.constant 0 : i32
    return %2, %c0_i32_0 : i32, i32
  }
  func.func @transform_2(%arg0: i32, %arg1: i32) -> (i32, i32, i32) {
    %c0_i32 = arith.constant 0 : i32
    %c0_i32_0 = arith.constant 0 : i32
    %c0_i32_1 = arith.constant 0 : i32
    return %arg0, %c0_i32, %c0_i32_0 : i32, i32, i32
  }
}

</mosaic_0001>

<llo_original>
// kernel: tpu_custom_call.1
$region0: #{tpu_custom_call.1}
  #allocation0 [shape = 'u32[]', space=smem, size = 0x4, offset = 0x4, fixed_abs, tag = 'smem constant byte address 0x4 - core index']
  #allocation1 [shape = 'u32[144,128]{1,0:T(1,128)}', space=vmem, size = 0x12000, scoped, tag = 'internal scratch']
  #allocation2 [shape = 'f32[8,128]{1,0:T(8,128)}', space=vmem, size = 0x1000, scoped, tag = 'scratch operand']
  %s0 = inlined_call_operand.hbm [shape: f32[16,128], index: 0, kind: input, shape index: {}]
  %s1 = inlined_call_operand.hbm [shape: f32[16,128], index: 1, kind: input, shape index: {}]
  %s2 = inlined_call_operand.hbm [shape: f32[1,1,128], index: 2, kind: output, shape index: {}]
  %s3 = sld [smem:[#allocation0]]
  $region34: #{tpu_custom_call.1} parent=0
    _
  %s5 = ssub.s32 1, %s3
  %s6 = scalar_select 0, %s5, %s3
  $region1: #{tpu_custom_call.1} parent=0
    #allocation3 [shape = 'u8[8192]{0}', space=vmem, size = 0x2000, scoped, tag = 'input window, operand 0, single buffered']
    #allocation4 [shape = 's32[1]{0}', space=sflag, size = 0x4, scoped, tag = 'scoped memory for tpu_custom_call.1']
    #allocation5 [shape = 's32[1]{0}', space=sflag, size = 0x4, scoped, tag = 'scoped memory for tpu_custom_call.1']
    #allocation6 [shape = 'u8[8192]{0}', space=vmem, size = 0x2000, scoped, tag = 'input window, operand 1, single buffered']
    #allocation7 [shape = 's32[1]{0}', space=sflag, size = 0x4, scoped, tag = 'scoped memory for tpu_custom_call.1']
    #allocation8 [shape = 'u8[512]{0}', space=vmem, size = 0x400, scoped, tag = 'output window, operand 0, single buffered']
    %7 = vsyncpa [#allocation4], 0
    %8 = vsyncpa [#allocation7], 0
    %9 = vsyncpa [#allocation5], 0
    // Predicated region
    $region2: #{tpu_custom_call.1} parent=1 // pred_check
      _
    $region3: #{tpu_custom_call.1} parent=1 // pred_check_branch
      %11 = sbr.rel (0) target = $region5
    $region4: #{tpu_custom_call.1} parent=1 // pred_region
      %s12 = sadd.s32 0, 0
      %p13 = scmp.lt.s32.totalorder %s12, 0
      %s14 = scalar_select %p13, %s12, 0
      %s15 = smul.u32 2, %s14
      %s17 = ssub.s32 256, 256
      %18 = vsyncadd [#allocation4], %s17
      %s19 = smul.addr %s15, 128
      %s20 = scalar_lea.hbm %s0, %s19
      %s21 = sshll.u32 [#allocation3], 4
      %s22 = int_to_ptr.vmem [resolvable:$true] %s21
      %27 = dma.hbm_to_vmem [thread:$0]  %s20, 256, %s22, [#allocation4], 128, 128, 8
    $region5: #{tpu_custom_call.1} parent=1 // pred_fallthru
      _
    // Predicated region
    $region6: #{tpu_custom_call.1} parent=1 // pred_check
      _
    $region7: #{tpu_custom_call.1} parent=1 // pred_check_branch
      %29 = sbr.rel (0) target = $region9
    $region8: #{tpu_custom_call.1} parent=1 // pred_region
      %s30 = sadd.s32 0, 0
      %p31 = scmp.lt.s32.totalorder %s30, 0
      %s32 = scalar_select %p31, %s30, 0
      %s33 = smul.u32 2, %s32
      %s35 = ssub.s32 256, 256
      %36 = vsyncadd [#allocation7], %s35
      %s37 = smul.addr %s33, 128
      %s38 = scalar_lea.hbm %s1, %s37
      %s39 = sshll.u32 [#allocation6], 4
      %s40 = int_to_ptr.vmem [resolvable:$true] %s39
      %45 = dma.hbm_to_vmem [thread:$0]  %s38, 256, %s40, [#allocation7], 128, 128, 8
    $region9: #{tpu_custom_call.1} parent=1 // pred_fallthru
      _
    // Predicated region
    $region10: #{tpu_custom_call.1} parent=1 // pred_check
      _
    $region11: #{tpu_custom_call.1} parent=1 // pred_check_branch
      %47 = sbr.rel (0) target = $region13
    $region12: #{tpu_custom_call.1} parent=1 // pred_region
      %48 = dma.done [#allocation4], 256
    $region13: #{tpu_custom_call.1} parent=1 // pred_fallthru
      _
    // Predicated region
    $region14: #{tpu_custom_call.1} parent=1 // pred_check
      _
    $region15: #{tpu_custom_call.1} parent=1 // pred_check_branch
      %50 = sbr.rel (0) target = $region17
    $region16: #{tpu_custom_call.1} parent=1 // pred_region
      %51 = dma.done [#allocation7], 256
    $region17: #{tpu_custom_call.1} parent=1 // pred_fallthru
      _
    %s52 = sadd.s32 0, 0
    %p53 = scmp.lt.s32.totalorder %s52, 0
    %s54 = scalar_select %p53, %s52, 0
    %s55 = smul.u32 2, %s54
    %s56 = sadd.s32 0, 0
    %p57 = scmp.lt.s32.totalorder %s56, 0
    %s58 = scalar_select %p57, %s56, 0
    %s59 = smul.u32 2, %s58
    %p60 = scmp.eq.s32.totalorder 0, 0
    // Predicated region
    $region18: #{tpu_custom_call.1} parent=1 // pred_check
      %p61 = pneg %p60
    $region19: #{tpu_custom_call.1} parent=1 // pred_check_branch
      %63 = sbr.rel (%p61) target = $region21
    $region20: #{tpu_custom_call.1} parent=1 // pred_region
      %64 = vst [vmem:[#allocation2] sm:$0xff] 0.0
    $region21: #{tpu_custom_call.1} parent=1 // pred_fallthru
      _
    %v65 = vld [vmem:[#allocation3] sm:$0xff]
    %v66 = vld [vmem:[#allocation3 + $0x8] sm:$0xff]
    %v67 = vld [vmem:[#allocation6] sm:$0xff]
    %v68 = vld [vmem:[#allocation6 + $0x8] sm:$0xff]
    %v69 = vsub.f32 %v65, %v67
    %v70 = vsub.f32 %v66, %v68
    %v71 = vadd.f32 %v67, 1e-08
    %v72 = vadd.f32 %v68, 1e-08
    %v73 = vrcp.pop %v71
    %v74 = vmul.f32 %v69, %v73
    %v75 = vrcp.pop %v72
    %v76 = vmul.f32 %v70, %v75
    %v77 = vand.u32 2147483647, %v74
    %v78 = vand.u32 2147483647, %v76
    %v79 = vld [vmem:[#allocation2] sm:$0xff]
    %v80 = vadd.f32 %v77, %v78
    %v81 = vadd.f32 %v79, %v80
    %82 = vst [vmem:[#allocation2] sm:$0xff] %v81
    // Predicated region
    $region22: #{tpu_custom_call.1} parent=1 // pred_check
      %p83 = pneg %p60
    $region23: #{tpu_custom_call.1} parent=1 // pred_check_branch
      %85 = sbr.rel (%p83) target = $region25
    $region24: #{tpu_custom_call.1} parent=1 // pred_region
      %v86 = vld [vmem:[#allocation2] sm:$0xff]
      %v87 = vrot.slane %v86, 4
      %v88 = vadd.f32 %v86, %v87
      %v89 = vrot.slane %v88, 2
      %v90 = vadd.f32 %v88, %v89
      %v91 = vrot.slane %v90, 1
      %v92 = vadd.f32 %v90, %v91
      %93 = vst [vmem:[#allocation8] sm:$0x1] %v92
    $region25: #{tpu_custom_call.1} parent=1 // pred_fallthru
      _
    // Predicated region
    $region26: #{tpu_custom_call.1} parent=1 // pred_check
      _
    $region27: #{tpu_custom_call.1} parent=1 // pred_check_branch
      %95 = sbr.rel (0) target = $region29
    $region28: #{tpu_custom_call.1} parent=1 // pred_region
      %s97 = ssub.s32 16, 16
      %98 = vsyncadd [#allocation5], %s97
      %s100 = sshll.u32 [#allocation8], 4
      %s101 = int_to_ptr.vmem [resolvable:$true] %s100
      %103 = dma.vmem_to_hbm [thread:$0]  %s101, 16, %s2, [#allocation5]
    $region29: #{tpu_custom_call.1} parent=1 // pred_fallthru
      _
    // Predicated region
    $region30: #{tpu_custom_call.1} parent=1 // pred_check
      _
    $region31: #{tpu_custom_call.1} parent=1 // pred_check_branch
      %105 = sbr.rel (0) target = $region33
    $region32: #{tpu_custom_call.1} parent=1 // pred_region
      %106 = dma.done [#allocation5], 16
    $region33: #{tpu_custom_call.1} parent=1 // pred_fallthru
      _
    %107 = vsyncpa [#allocation4], 1
    %108 = vsyncpa [#allocation7], 1
    %109 = vsyncpa [#allocation5], 1

</llo_original>
